<compile_context>
chip_gen: v7x
topology: tpu7x:2x2x1
jax: 0.10.0
libtpu: 0.0.40
codegen_flags: <defaults>
</compile_context>

<pallas_src>
import functools

import jax
import jax.numpy as jnp
from jax import lax
from jax.experimental import pallas as pl
from jax.experimental.pallas import tpu as pltpu


OUT_LANES = 128  # packed output slab width (lane-dense)


def _round_up(n, m):
    return ((n + m - 1) // m) * m


def ppo_forward_kernel(x_ref, g_ref, w1_ref, b1_ref, w2_ref, b2_ref,
                       wh_ref, bh_ref, out_ref, *, n_actions):
    # --- MLP trunk: Linear -> Tanh -> Linear -> Tanh (bf16 matmul, f32 acc) ---
    x = x_ref[...]                                                    # bf16 [TB, IP]
    h1 = jnp.tanh(jnp.dot(x, w1_ref[...],
                          preferred_element_type=jnp.float32) + b1_ref[...])
    h2 = jnp.tanh(jnp.dot(h1.astype(jnp.bfloat16), w2_ref[...],
                          preferred_element_type=jnp.float32) + b2_ref[...])

    # --- fused policy + value head: [TB, AP], logits in lanes [0, A), value in lane A ---
    head = jnp.dot(h2.astype(jnp.bfloat16), wh_ref[...],
                   preferred_element_type=jnp.float32) + bh_ref[...]
    TB, AP = head.shape
    lane = lax.broadcasted_iota(jnp.int32, (TB, AP), 1)
    valid = lane < n_actions

    value = jnp.sum(jnp.where(lane == n_actions, head, 0.0),
                    axis=-1, keepdims=True)                           # [TB, 1]

    neg_big = jnp.float32(-1e30)
    logits = jnp.where(valid, head, neg_big)                          # mask padded lanes

    # --- Gumbel-max sampling: argmax(logits + G) (G padded with zeros) ---
    perturbed = logits + g_ref[...]
    pmax = jnp.max(perturbed, axis=-1, keepdims=True)
    action = jnp.min(jnp.where(perturbed >= pmax, lane, jnp.int32(AP)),
                     axis=-1, keepdims=True)                          # [TB, 1] int32

    # --- log-softmax / selected log_prob / entropy over valid lanes only ---
    m = jnp.max(logits, axis=-1, keepdims=True)
    z = logits - m
    exp_z = jnp.where(valid, jnp.exp(z), 0.0)
    sum_exp = jnp.sum(exp_z, axis=-1, keepdims=True)
    log_probs = z - jnp.log(sum_exp)
    probs = exp_z * pl.reciprocal(sum_exp, approx=True)

    onehot = lane == action
    sel_logp = jnp.sum(jnp.where(onehot, log_probs, 0.0),
                       axis=-1, keepdims=True)                        # [TB, 1]
    nlp = -sel_logp
    safe_logp = jnp.where(valid, log_probs, 0.0)                      # avoid 0 * -inf
    ent = -jnp.sum(probs * safe_logp, axis=-1, keepdims=True)

    # --- pack into one lane-dense slab: [value, action, nlp, ent, 0 ...] ---
    out_lane = lax.broadcasted_iota(jnp.int32, out_ref.shape, 1)
    slab = jnp.where(out_lane == 0, value,
           jnp.where(out_lane == 1, action.astype(jnp.float32),
           jnp.where(out_lane == 2, nlp,
           jnp.where(out_lane == 3, ent, 0.0))))
    out_ref[...] = slab.astype(out_ref.dtype)


def ppo_forward(x, params, gumbel, *, tile_b=None):
    """Fused PPO forward.

    Args:
      x:      [B, input_dim] float32 observations.
      params: (w1, b1, w2, b2, wp, bp, wv, bv), weights stored [in, out],
              biases [1, out] (transposed vs. torch nn.Linear).
      gumbel: [B, action_space] float32 standard Gumbel noise (for sampling).

    Returns (value_f [B,1] f32, action [B] int32, neg_log_prob [B] f32,
             entropy [B] f32) — matching the torch forward semantics.
    """
    w1, b1, w2, b2, wp, bp, wv, bv = params
    B, input_dim = x.shape
    hidden = w1.shape[1]
    A = wp.shape[1]

    IP = _round_up(input_dim, 128)
    HP = _round_up(hidden, 128)
    AP = _round_up(A + 1, 128)          # logits + value lane, lane-padded

    if tile_b is None:
        # >=512 rows hits ~85% of HBM roofline on large batches; clamp for tiny B.
        tile_b = min(512, _round_up(B, 8))
    tile_b = _round_up(tile_b, 8)
    B_pad = _round_up(B, tile_b)
    num_tiles = B_pad // tile_b

    def pad2(a, r, c):
        return jnp.pad(a, ((0, r - a.shape[0]), (0, c - a.shape[1])))

    # activations / noise (zero padding -> finite garbage rows, dropped later)
    x_p = pad2(x, B_pad, IP).astype(jnp.bfloat16)
    g_p = pad2(gumbel, B_pad, AP).astype(jnp.float32)

    # weights: bf16 matmul inputs, f32 biases; fused policy||value head
    w1_p = pad2(w1, IP, HP).astype(jnp.bfloat16)
    w2_p = pad2(w2, HP, HP).astype(jnp.bfloat16)
    wh_p = pad2(jnp.concatenate([wp, wv], axis=1), HP, AP).astype(jnp.bfloat16)
    b1_p = pad2(b1.reshape(1, -1), 1, HP).astype(jnp.float32)
    b2_p = pad2(b2.reshape(1, -1), 1, HP).astype(jnp.float32)
    bh_p = pad2(jnp.concatenate([bp.reshape(1, -1), bv.reshape(1, -1)], axis=1),
                1, AP).astype(jnp.float32)

    kernel = functools.partial(ppo_forward_kernel, n_actions=A)

    out = pl.pallas_call(
        kernel,
        out_shape=jax.ShapeDtypeStruct((B_pad, OUT_LANES), jnp.float32),
        grid=(num_tiles,),
        in_specs=[
            pl.BlockSpec((tile_b, IP), lambda i: (i, 0)),   # x      (tiled)
            pl.BlockSpec((tile_b, AP), lambda i: (i, 0)),   # gumbel (tiled)
            pl.BlockSpec((IP, HP), lambda i: (0, 0)),       # w1     (resident)
            pl.BlockSpec((1, HP), lambda i: (0, 0)),        # b1
            pl.BlockSpec((HP, HP), lambda i: (0, 0)),       # w2
            pl.BlockSpec((1, HP), lambda i: (0, 0)),        # b2
            pl.BlockSpec((HP, AP), lambda i: (0, 0)),       # fused head w
            pl.BlockSpec((1, AP), lambda i: (0, 0)),        # fused head b
        ],
        out_specs=pl.BlockSpec((tile_b, OUT_LANES), lambda i: (i, 0)),
        compiler_params=pltpu.CompilerParams(
            dimension_semantics=("parallel",),
            vmem_limit_bytes=32 * 1024 * 1024,
        ),
    )(x_p, g_p, w1_p, b1_p, w2_p, b2_p, wh_p, bh_p)

    out = out[:B]
    value_f = out[:, 0:1]
    action = out[:, 1].astype(jnp.int32)
    neg_log_prob = out[:, 2]
    entropy = out[:, 3]
    return value_f, action, neg_log_prob, entropy


def init_params(key, input_dim, hidden_dim, action_space):
    """Deterministic synthetic parameter init (shapes match PPO.__init__)."""
    ks = jax.random.split(key, 4)

    def linear(k, fan_in, fan_out):
        # weights stored [in, out] (transposed vs. torch nn.Linear)
        w = jax.random.normal(k, (fan_in, fan_out), jnp.float32) * (1.0 / jnp.sqrt(fan_in))
        b = jnp.zeros((1, fan_out), jnp.float32)
        return w, b

    w1, b1 = linear(ks[0], input_dim, hidden_dim)
    w2, b2 = linear(ks[1], hidden_dim, hidden_dim)
    wp, bp = linear(ks[2], hidden_dim, action_space)
    wv, bv = linear(ks[3], hidden_dim, 1)
    return (w1, b1, w2, b2, wp, bp, wv, bv)


if __name__ == "__main__":
    B, input_dim, hidden_dim, action_space = 8, 16, 32, 4

    key = jax.random.PRNGKey(0)
    k_x, k_p, k_g = jax.random.split(key, 3)

    x = jax.random.normal(k_x, (B, input_dim), jnp.float32)
    params = init_params(k_p, input_dim, hidden_dim, action_space)
    # standard Gumbel noise for the in-kernel Gumbel-max categorical sample
    gumbel = jax.random.gumbel(k_g, (B, action_space), jnp.float32)

    value_f, action, neg_log_prob, entropy = ppo_forward(x, params, gumbel)
    jax.block_until_ready((value_f, action, neg_log_prob, entropy))

    # sanity: shapes / ranges match torch forward semantics
    assert value_f.shape == (B, 1)
    assert action.shape == (B,) and action.dtype == jnp.int32
    assert neg_log_prob.shape == (B,)
    assert entropy.shape == (B,)
    assert bool(jnp.all((action >= 0) & (action < action_space)))
    assert bool(jnp.all(jnp.isfinite(value_f)))
    assert bool(jnp.all(jnp.isfinite(neg_log_prob)))
    assert bool(jnp.all(jnp.isfinite(entropy)))

    print("KERNEL_OK")
</pallas_src>

<mosaic_0001>
module attributes {stable_mosaic.version = 11 : i64} {
  func.func @ppo_forward_kernel(%arg0: i32, %arg1: memref<8x128xbf16, #tpu.memory_space<vmem>>, %arg2: memref<8x128xf32, #tpu.memory_space<vmem>>, %arg3: memref<128x128xbf16, #tpu.memory_space<vmem>>, %arg4: memref<1x128xf32, #tpu.memory_space<vmem>>, %arg5: memref<128x128xbf16, #tpu.memory_space<vmem>>, %arg6: memref<1x128xf32, #tpu.memory_space<vmem>>, %arg7: memref<128x128xbf16, #tpu.memory_space<vmem>>, %arg8: memref<1x128xf32, #tpu.memory_space<vmem>>, %arg9: memref<8x128xf32, #tpu.memory_space<vmem>>) attributes {dimension_semantics = [#tpu.dimension_semantics<parallel>], iteration_bounds = array<i64: 1>, scalar_prefetch = 0 : i64, scratch_operands = 0 : i64, tpu.core_type = #tpu.core_type<tc>, window_params = [{transform_indices = @transform_0, window_bounds = array<i64: 8, 128>}, {transform_indices = @transform_1, window_bounds = array<i64: 8, 128>}, {pipeline_mode = #tpu.pipeline_mode<synchronous>, transform_indices = @transform_2, window_bounds = array<i64: 128, 128>}, {pipeline_mode = #tpu.pipeline_mode<synchronous>, transform_indices = @transform_3, window_bounds = array<i64: 1, 128>}, {pipeline_mode = #tpu.pipeline_mode<synchronous>, transform_indices = @transform_4, window_bounds = array<i64: 128, 128>}, {pipeline_mode = #tpu.pipeline_mode<synchronous>, transform_indices = @transform_5, window_bounds = array<i64: 1, 128>}, {pipeline_mode = #tpu.pipeline_mode<synchronous>, transform_indices = @transform_6, window_bounds = array<i64: 128, 128>}, {pipeline_mode = #tpu.pipeline_mode<synchronous>, transform_indices = @transform_7, window_bounds = array<i64: 1, 128>}, {transform_indices = @transform_8, window_bounds = array<i64: 8, 128>}]} {
    %c0 = arith.constant 0 : index
    %c0_0 = arith.constant 0 : index
    %0 = vector.load %arg1[%c0, %c0_0] : memref<8x128xbf16, #tpu.memory_space<vmem>>, vector<8x128xbf16>
    %c0_1 = arith.constant 0 : index
    %c0_2 = arith.constant 0 : index
    %1 = vector.load %arg3[%c0_1, %c0_2] : memref<128x128xbf16, #tpu.memory_space<vmem>>, vector<128x128xbf16>
    %cst = arith.constant dense<0.000000e+00> : vector<8x128xf32>
    %2 = tpu.matmul %0, %1, %cst {dimension_numbers = #tpu.dot_dimension_numbers<[1], [0], [0], [1], [0, 0, 1, 1], [], []>} : vector<8x128xbf16>, vector<128x128xbf16>, vector<8x128xf32> -> vector<8x128xf32>
    %c0_3 = arith.constant 0 : index
    %c0_4 = arith.constant 0 : index
    %3 = vector.load %arg4[%c0_3, %c0_4] : memref<1x128xf32, #tpu.memory_space<vmem>>, vector<1x128xf32>
    %4 = vector.broadcast %3 : vector<1x128xf32> to vector<8x128xf32>
    %5 = arith.addf %2, %4 : vector<8x128xf32>
    %6 = math.tanh %5 : vector<8x128xf32>
    %7 = arith.truncf %6 : vector<8x128xf32> to vector<8x128xbf16>
    %c0_5 = arith.constant 0 : index
    %c0_6 = arith.constant 0 : index
    %8 = vector.load %arg5[%c0_5, %c0_6] : memref<128x128xbf16, #tpu.memory_space<vmem>>, vector<128x128xbf16>
    %cst_7 = arith.constant dense<0.000000e+00> : vector<8x128xf32>
    %9 = tpu.matmul %7, %8, %cst_7 {dimension_numbers = #tpu.dot_dimension_numbers<[1], [0], [0], [1], [0, 0, 1, 1], [], []>} : vector<8x128xbf16>, vector<128x128xbf16>, vector<8x128xf32> -> vector<8x128xf32>
    %c0_8 = arith.constant 0 : index
    %c0_9 = arith.constant 0 : index
    %10 = vector.load %arg6[%c0_8, %c0_9] : memref<1x128xf32, #tpu.memory_space<vmem>>, vector<1x128xf32>
    %11 = vector.broadcast %10 : vector<1x128xf32> to vector<8x128xf32>
    %12 = arith.addf %9, %11 : vector<8x128xf32>
    %13 = math.tanh %12 : vector<8x128xf32>
    %14 = arith.truncf %13 : vector<8x128xf32> to vector<8x128xbf16>
    %c0_10 = arith.constant 0 : index
    %c0_11 = arith.constant 0 : index
    %15 = vector.load %arg7[%c0_10, %c0_11] : memref<128x128xbf16, #tpu.memory_space<vmem>>, vector<128x128xbf16>
    %cst_12 = arith.constant dense<0.000000e+00> : vector<8x128xf32>
    %16 = tpu.matmul %14, %15, %cst_12 {dimension_numbers = #tpu.dot_dimension_numbers<[1], [0], [0], [1], [0, 0, 1, 1], [], []>} : vector<8x128xbf16>, vector<128x128xbf16>, vector<8x128xf32> -> vector<8x128xf32>
    %c0_13 = arith.constant 0 : index
    %c0_14 = arith.constant 0 : index
    %17 = vector.load %arg8[%c0_13, %c0_14] : memref<1x128xf32, #tpu.memory_space<vmem>>, vector<1x128xf32>
    %18 = vector.broadcast %17 : vector<1x128xf32> to vector<8x128xf32>
    %19 = arith.addf %16, %18 : vector<8x128xf32>
    %20 = tpu.iota {dimensions = array<i32: 1>} : vector<8x128xi32>
    %c4_i32 = arith.constant 4 : i32
    %21 = vector.broadcast %c4_i32 : i32 to vector<8x128xi32>
    %22 = arith.cmpi slt, %20, %21 : vector<8x128xi32>
    %c4_i32_15 = arith.constant 4 : i32
    %23 = vector.broadcast %c4_i32_15 : i32 to vector<8x128xi32>
    %24 = arith.cmpi eq, %20, %23 : vector<8x128xi32>
    %cst_16 = arith.constant 0.000000e+00 : f32
    %25 = vector.broadcast %cst_16 : f32 to vector<8x128xf32>
    %26 = arith.select %24, %19, %25 : vector<8x128xi1>, vector<8x128xf32>
    %cst_17 = arith.constant dense<0.000000e+00> : vector<8xf32>
    %27 = vector.multi_reduction <add>, %26, %cst_17 [1] : vector<8x128xf32> to vector<8xf32>
    %28 = vector.shape_cast %27 : vector<8xf32> to vector<8x1xf32>
    %cst_18 = arith.constant -1.000000e+30 : f32
    %29 = vector.broadcast %cst_18 : f32 to vector<8x128xf32>
    %30 = arith.select %22, %19, %29 : vector<8x128xi1>, vector<8x128xf32>
    %c0_19 = arith.constant 0 : index
    %c0_20 = arith.constant 0 : index
    %31 = vector.load %arg2[%c0_19, %c0_20] : memref<8x128xf32, #tpu.memory_space<vmem>>, vector<8x128xf32>
    %32 = arith.addf %30, %31 : vector<8x128xf32>
    %cst_21 = arith.constant dense<0xFF800000> : vector<8xf32>
    %33 = vector.multi_reduction <maximumf>, %32, %cst_21 [1] : vector<8x128xf32> to vector<8xf32>
    %34 = vector.shape_cast %33 : vector<8xf32> to vector<8x1xf32>
    %35 = vector.broadcast %34 : vector<8x1xf32> to vector<8x128xf32>
    %36 = arith.cmpf oge, %32, %35 : vector<8x128xf32>
    %c128_i32 = arith.constant 128 : i32
    %37 = vector.broadcast %c128_i32 : i32 to vector<8x128xi32>
    %38 = arith.select %36, %20, %37 : vector<8x128xi1>, vector<8x128xi32>
    %cst_22 = arith.constant dense<2147483647> : vector<8xi32>
    %39 = vector.multi_reduction <minsi>, %38, %cst_22 [1] : vector<8x128xi32> to vector<8xi32>
    %40 = vector.shape_cast %39 : vector<8xi32> to vector<8x1xi32>
    %cst_23 = arith.constant dense<0xFF800000> : vector<8xf32>
    %41 = vector.multi_reduction <maximumf>, %30, %cst_23 [1] : vector<8x128xf32> to vector<8xf32>
    %42 = vector.shape_cast %41 : vector<8xf32> to vector<8x1xf32>
    %43 = vector.broadcast %42 : vector<8x1xf32> to vector<8x128xf32>
    %44 = arith.subf %30, %43 : vector<8x128xf32>
    %45 = math.exp %44 : vector<8x128xf32>
    %cst_24 = arith.constant 0.000000e+00 : f32
    %46 = vector.broadcast %cst_24 : f32 to vector<8x128xf32>
    %47 = arith.select %22, %45, %46 : vector<8x128xi1>, vector<8x128xf32>
    %cst_25 = arith.constant dense<0.000000e+00> : vector<8xf32>
    %48 = vector.multi_reduction <add>, %47, %cst_25 [1] : vector<8x128xf32> to vector<8xf32>
    %49 = vector.shape_cast %48 : vector<8xf32> to vector<8x1xf32>
    %50 = math.log %49 : vector<8x1xf32>
    %51 = vector.broadcast %50 : vector<8x1xf32> to vector<8x128xf32>
    %52 = arith.subf %44, %51 : vector<8x128xf32>
    %53 = tpu.reciprocal %49 {approx = true} : vector<8x1xf32> -> vector<8x1xf32>
    %54 = vector.broadcast %53 : vector<8x1xf32> to vector<8x128xf32>
    %55 = arith.mulf %47, %54 : vector<8x128xf32>
    %56 = vector.broadcast %40 : vector<8x1xi32> to vector<8x128xi32>
    %57 = arith.cmpi eq, %20, %56 : vector<8x128xi32>
    %cst_26 = arith.constant 0.000000e+00 : f32
    %58 = vector.broadcast %cst_26 : f32 to vector<8x128xf32>
    %59 = arith.select %57, %52, %58 : vector<8x128xi1>, vector<8x128xf32>
    %cst_27 = arith.constant dense<0.000000e+00> : vector<8xf32>
    %60 = vector.multi_reduction <add>, %59, %cst_27 [1] : vector<8x128xf32> to vector<8xf32>
    %61 = vector.shape_cast %60 : vector<8xf32> to vector<8x1xf32>
    %cst_28 = arith.constant 0.000000e+00 : f32
    %62 = vector.broadcast %cst_28 : f32 to vector<8x1xf32>
    %63 = arith.subf %62, %61 : vector<8x1xf32>
    %cst_29 = arith.constant 0.000000e+00 : f32
    %64 = vector.broadcast %cst_29 : f32 to vector<8x128xf32>
    %65 = arith.select %22, %52, %64 : vector<8x128xi1>, vector<8x128xf32>
    %66 = arith.mulf %55, %65 : vector<8x128xf32>
    %cst_30 = arith.constant dense<0.000000e+00> : vector<8xf32>
    %67 = vector.multi_reduction <add>, %66, %cst_30 [1] : vector<8x128xf32> to vector<8xf32>
    %68 = vector.shape_cast %67 : vector<8xf32> to vector<8x1xf32>
    %cst_31 = arith.constant 0.000000e+00 : f32
    %69 = vector.broadcast %cst_31 : f32 to vector<8x1xf32>
    %70 = arith.subf %69, %68 : vector<8x1xf32>
    %71 = tpu.iota {dimensions = array<i32: 1>} : vector<8x128xi32>
    %c0_i32 = arith.constant 0 : i32
    %72 = vector.broadcast %c0_i32 : i32 to vector<8x128xi32>
    %73 = arith.cmpi eq, %71, %72 : vector<8x128xi32>
    %c1_i32 = arith.constant 1 : i32
    %74 = vector.broadcast %c1_i32 : i32 to vector<8x128xi32>
    %75 = arith.cmpi eq, %71, %74 : vector<8x128xi32>
    %76 = arith.sitofp %40 : vector<8x1xi32> to vector<8x1xf32>
    %c2_i32 = arith.constant 2 : i32
    %77 = vector.broadcast %c2_i32 : i32 to vector<8x128xi32>
    %78 = arith.cmpi eq, %71, %77 : vector<8x128xi32>
    %c3_i32 = arith.constant 3 : i32
    %79 = vector.broadcast %c3_i32 : i32 to vector<8x128xi32>
    %80 = arith.cmpi eq, %71, %79 : vector<8x128xi32>
    %cst_32 = arith.constant 0.000000e+00 : f32
    %81 = vector.shape_cast %70 : vector<8x1xf32> to vector<8x1xf32>
    %82 = vector.broadcast %81 : vector<8x1xf32> to vector<8x128xf32>
    %83 = vector.broadcast %cst_32 : f32 to vector<8x128xf32>
    %84 = arith.select %80, %82, %83 : vector<8x128xi1>, vector<8x128xf32>
    %85 = vector.shape_cast %63 : vector<8x1xf32> to vector<8x1xf32>
    %86 = vector.broadcast %85 : vector<8x1xf32> to vector<8x128xf32>
    %87 = arith.select %78, %86, %84 : vector<8x128xi1>, vector<8x128xf32>
    %88 = vector.shape_cast %76 : vector<8x1xf32> to vector<8x1xf32>
    %89 = vector.broadcast %88 : vector<8x1xf32> to vector<8x128xf32>
    %90 = arith.select %75, %89, %87 : vector<8x128xi1>, vector<8x128xf32>
    %91 = vector.shape_cast %28 : vector<8x1xf32> to vector<8x1xf32>
    %92 = vector.broadcast %91 : vector<8x1xf32> to vector<8x128xf32>
    %93 = arith.select %73, %92, %90 : vector<8x128xi1>, vector<8x128xf32>
    %c0_33 = arith.constant 0 : index
    %c0_34 = arith.constant 0 : index
    %94 = vector.load %arg9[%c0_33, %c0_34] : memref<8x128xf32, #tpu.memory_space<vmem>>, vector<8x128xf32>
    tpu.vector_store %arg9[%c0_33, %c0_34], %93 {strides = array<i32>} : memref<8x128xf32, #tpu.memory_space<vmem>>, vector<8x128xf32>,
    return
  }
  func.func @transform_0(%arg0: i32) -> (i32, i32) {
    %c0_i32 = arith.constant 0 : i32
    %c0_i32_0 = arith.constant 0 : i32
    return %arg0, %c0_i32 : i32, i32
  }
  func.func @transform_1(%arg0: i32) -> (i32, i32) {
    %c0_i32 = arith.constant 0 : i32
    %c0_i32_0 = arith.constant 0 : i32
    return %arg0, %c0_i32 : i32, i32
  }
  func.func @transform_2(%arg0: i32) -> (i32, i32) {
    %c0_i32 = arith.constant 0 : i32
    %c0_i32_0 = arith.constant 0 : i32
    %c0_i32_1 = arith.constant 0 : i32
    return %c0_i32, %c0_i32_0 : i32, i32
  }
  func.func @transform_3(%arg0: i32) -> (i32, i32) {
    %c0_i32 = arith.constant 0 : i32
    %c0_i32_0 = arith.constant 0 : i32
    %c0_i32_1 = arith.constant 0 : i32
    return %c0_i32, %c0_i32_0 : i32, i32
  }
  func.func @transform_4(%arg0: i32) -> (i32, i32) {
    %c0_i32 = arith.constant 0 : i32
    %c0_i32_0 = arith.constant 0 : i32
    %c0_i32_1 = arith.constant 0 : i32
    return %c0_i32, %c0_i32_0 : i32, i32
  }
  func.func @transform_5(%arg0: i32) -> (i32, i32) {
    %c0_i32 = arith.constant 0 : i32
    %c0_i32_0 = arith.constant 0 : i32
    %c0_i32_1 = arith.constant 0 : i32
    return %c0_i32, %c0_i32_0 : i32, i32
  }
  func.func @transform_6(%arg0: i32) -> (i32, i32) {
    %c0_i32 = arith.constant 0 : i32
    %c0_i32_0 = arith.constant 0 : i32
    %c0_i32_1 = arith.constant 0 : i32
    return %c0_i32, %c0_i32_0 : i32, i32
  }
  func.func @transform_7(%arg0: i32) -> (i32, i32) {
    %c0_i32 = arith.constant 0 : i32
    %c0_i32_0 = arith.constant 0 : i32
    %c0_i32_1 = arith.constant 0 : i32
    return %c0_i32, %c0_i32_0 : i32, i32
  }
  func.func @transform_8(%arg0: i32) -> (i32, i32) {
    %c0_i32 = arith.constant 0 : i32
    %c0_i32_0 = arith.constant 0 : i32
    return %arg0, %c0_i32 : i32, i32
  }
}

</mosaic_0001>

<llo_original>
// kernel: tpu_custom_call.1
$region0: #{tpu_custom_call.1}
  #allocation0 [shape = 'u32[]', space=smem, size = 0x4, offset = 0x4, fixed_abs, tag = 'smem constant byte address 0x4 - core index']
  #allocation1 [shape = 'u32[144,128]{1,0:T(1,128)}', space=vmem, size = 0x12000, scoped, tag = 'internal scratch']
  %s0 = inlined_call_operand.hbm [shape: bf16[8,128], index: 0, kind: input, shape index: {}]
  %s1 = inlined_call_operand.hbm [shape: f32[8,128], index: 1, kind: input, shape index: {}]
  %s2 = inlined_call_operand.hbm [shape: bf16[128,128], index: 2, kind: input, shape index: {}]
  %s3 = inlined_call_operand.vmem [shape: f32[1,128], index: 3, kind: input, shape index: {}]
  %s4 = inlined_call_operand.hbm [shape: bf16[128,128], index: 4, kind: input, shape index: {}]
  %s5 = inlined_call_operand.vmem [shape: f32[1,128], index: 5, kind: input, shape index: {}]
  %s6 = inlined_call_operand.hbm [shape: bf16[128,128], index: 6, kind: input, shape index: {}]
  %s7 = inlined_call_operand.vmem [shape: f32[1,128], index: 7, kind: input, shape index: {}]
  %s8 = inlined_call_operand.hbm [shape: f32[8,128], index: 8, kind: output, shape index: {}]
  %s9 = sld [smem:[#allocation0]]
  $region62: #{tpu_custom_call.1} parent=0
    _
  %s11 = ssub.s32 1, %s9
  %s12 = scalar_select 0, %s11, %s9
  $region1: #{tpu_custom_call.1} parent=0
    #allocation2 [shape = 'u8[2048]{0}', space=vmem, size = 0x800, scoped, tag = 'input window, operand 0, single buffered']
    #allocation3 [shape = 's32[1]{0}', space=sflag, size = 0x4, scoped, tag = 'scoped memory for tpu_custom_call.1']
    #allocation4 [shape = 's32[1]{0}', space=sflag, size = 0x4, scoped, tag = 'scoped memory for tpu_custom_call.1']
    #allocation5 [shape = 'u8[4096]{0}', space=vmem, size = 0x1000, scoped, tag = 'input window, operand 1, single buffered']
    #allocation6 [shape = 's32[1]{0}', space=sflag, size = 0x4, scoped, tag = 'scoped memory for tpu_custom_call.1']
    #allocation7 [shape = 'u8[32768]{0}', space=vmem, size = 0x8000, scoped, tag = 'input window, operand 2, single buffered']
    #allocation8 [shape = 'u8[32768]{0}', space=vmem, size = 0x8000, scoped, tag = 'input window, operand 4, single buffered']
    #allocation9 [shape = 's32[1]{0}', space=sflag, size = 0x4, scoped, tag = 'scoped memory for tpu_custom_call.1']
    #allocation10 [shape = 'u8[32768]{0}', space=vmem, size = 0x8000, scoped, tag = 'input window, operand 6, single buffered']
    #allocation11 [shape = 'u8[4096]{0}', space=vmem, size = 0x1000, scoped, tag = 'output window, operand 0, single buffered']
    %13 = vsyncpa [#allocation3], 0
    %14 = vsyncpa [#allocation6], 0
    %15 = vsyncpa [#allocation9], 0
    %16 = vsyncpa [#allocation4], 0
    // Predicated region
    $region2: #{tpu_custom_call.1} parent=1 // pred_check
      _
    $region3: #{tpu_custom_call.1} parent=1 // pred_check_branch
      %18 = sbr.rel (0) target = $region5
    $region4: #{tpu_custom_call.1} parent=1 // pred_region
      %s20 = ssub.s32 64, 64
      %21 = vsyncadd [#allocation3], %s20
      %s23 = sshll.u32 [#allocation2], 4
      %s24 = int_to_ptr.vmem [resolvable:$true] %s23
      %26 = dma.hbm_to_vmem [thread:$0]  %s0, 64, %s24, [#allocation3]
    $region5: #{tpu_custom_call.1} parent=1 // pred_fallthru
      _
    // Predicated region
    $region6: #{tpu_custom_call.1} parent=1 // pred_check
      _
    $region7: #{tpu_custom_call.1} parent=1 // pred_check_branch
      %28 = sbr.rel (0) target = $region9
    $region8: #{tpu_custom_call.1} parent=1 // pred_region
      %s30 = ssub.s32 128, 128
      %31 = vsyncadd [#allocation6], %s30
      %s33 = sshll.u32 [#allocation5], 4
      %s34 = int_to_ptr.vmem [resolvable:$true] %s33
      %36 = dma.hbm_to_vmem [thread:$0]  %s1, 128, %s34, [#allocation6]
    $region9: #{tpu_custom_call.1} parent=1 // pred_fallthru
      _
    // Predicated region
    $region10: #{tpu_custom_call.1} parent=1 // pred_check
      _
    $region11: #{tpu_custom_call.1} parent=1 // pred_check_branch
      %38 = sbr.rel (0) target = $region13
    $region12: #{tpu_custom_call.1} parent=1 // pred_region
      %s40 = ssub.s32 1024, 1024
      %41 = vsyncadd [#allocation6], %s40
      %s42 = sshll.u32 [#allocation7], 4
      %s43 = int_to_ptr.vmem [resolvable:$true] %s42
      %48 = dma.hbm_to_vmem [thread:$0]  %s2, 1024, %s43, [#allocation6], 64, 64, 4
    $region13: #{tpu_custom_call.1} parent=1 // pred_fallthru
      _
    // Predicated region
    $region14: #{tpu_custom_call.1} parent=1 // pred_check
      _
    $region15: #{tpu_custom_call.1} parent=1 // pred_check_branch
      %50 = sbr.rel (0) target = $region17
    $region16: #{tpu_custom_call.1} parent=1 // pred_region
      _
    $region17: #{tpu_custom_call.1} parent=1 // pred_fallthru
      _
    // Predicated region
    $region18: #{tpu_custom_call.1} parent=1 // pred_check
      _
    $region19: #{tpu_custom_call.1} parent=1 // pred_check_branch
      %52 = sbr.rel (0) target = $region21
    $region20: #{tpu_custom_call.1} parent=1 // pred_region
      %s54 = ssub.s32 1024, 1024
      %55 = vsyncadd [#allocation9], %s54
      %s56 = sshll.u32 [#allocation8], 4
      %s57 = int_to_ptr.vmem [resolvable:$true] %s56
      %62 = dma.hbm_to_vmem [thread:$0]  %s4, 1024, %s57, [#allocation9], 64, 64, 4
    $region21: #{tpu_custom_call.1} parent=1 // pred_fallthru
      _
    // Predicated region
    $region22: #{tpu_custom_call.1} parent=1 // pred_check
      _
    $region23: #{tpu_custom_call.1} parent=1 // pred_check_branch
      %64 = sbr.rel (0) target = $region25
    $region24: #{tpu_custom_call.1} parent=1 // pred_region
      _
    $region25: #{tpu_custom_call.1} parent=1 // pred_fallthru
      _
    // Predicated region
    $region26: #{tpu_custom_call.1} parent=1 // pred_check
      _
    $region27: #{tpu_custom_call.1} parent=1 // pred_check_branch
      %66 = sbr.rel (0) target = $region29
    $region28: #{tpu_custom_call.1} parent=1 // pred_region
      %s68 = ssub.s32 1024, 1024
      %69 = vsyncadd [#allocation9], %s68
      %s70 = sshll.u32 [#allocation10], 4
      %s71 = int_to_ptr.vmem [resolvable:$true] %s70
      %76 = dma.hbm_to_vmem [thread:$0]  %s6, 1024, %s71, [#allocation9], 64, 64, 4
    $region29: #{tpu_custom_call.1} parent=1 // pred_fallthru
      _
    // Predicated region
    $region30: #{tpu_custom_call.1} parent=1 // pred_check
      _
    $region31: #{tpu_custom_call.1} parent=1 // pred_check_branch
      %78 = sbr.rel (0) target = $region33
    $region32: #{tpu_custom_call.1} parent=1 // pred_region
      _
    $region33: #{tpu_custom_call.1} parent=1 // pred_fallthru
      _
    // Predicated region
    $region34: #{tpu_custom_call.1} parent=1 // pred_check
      _
    $region35: #{tpu_custom_call.1} parent=1 // pred_check_branch
      %80 = sbr.rel (0) target = $region37
    $region36: #{tpu_custom_call.1} parent=1 // pred_region
      %81 = dma.done [#allocation3], 64
    $region37: #{tpu_custom_call.1} parent=1 // pred_fallthru
      _
    // Predicated region
    $region38: #{tpu_custom_call.1} parent=1 // pred_check
      _
    $region39: #{tpu_custom_call.1} parent=1 // pred_check_branch
      %83 = sbr.rel (0) target = $region41
    $region40: #{tpu_custom_call.1} parent=1 // pred_region
      %84 = dma.done [#allocation6], 128
    $region41: #{tpu_custom_call.1} parent=1 // pred_fallthru
      _
    // Predicated region
    $region42: #{tpu_custom_call.1} parent=1 // pred_check
      _
    $region43: #{tpu_custom_call.1} parent=1 // pred_check_branch
      %86 = sbr.rel (0) target = $region45
    $region44: #{tpu_custom_call.1} parent=1 // pred_region
      %87 = dma.done [#allocation6], 1024
    $region45: #{tpu_custom_call.1} parent=1 // pred_fallthru
      _
    // Predicated region
    $region46: #{tpu_custom_call.1} parent=1 // pred_check
      _
    $region47: #{tpu_custom_call.1} parent=1 // pred_check_branch
      %89 = sbr.rel (0) target = $region49
    $region48: #{tpu_custom_call.1} parent=1 // pred_region
      %90 = dma.done [#allocation9], 1024
    $region49: #{tpu_custom_call.1} parent=1 // pred_fallthru
      _
    // Predicated region
    $region50: #{tpu_custom_call.1} parent=1 // pred_check
      _
    $region51: #{tpu_custom_call.1} parent=1 // pred_check_branch
      %92 = sbr.rel (0) target = $region53
    $region52: #{tpu_custom_call.1} parent=1 // pred_region
      %93 = dma.done [#allocation9], 1024
    $region53: #{tpu_custom_call.1} parent=1 // pred_fallthru
      _
    %v95 = vld [vmem:[#allocation2] sm:$0xf]
    %v96 = vld [vmem:[#allocation7] sm:$0xf]
    %v97 = vld [vmem:[#allocation7 + $0x4] sm:$0xf]
    %v98 = vld [vmem:[#allocation7 + $0x8] sm:$0xf]
    %v99 = vld [vmem:[#allocation7 + $0xc] sm:$0xf]
    %v100 = vld [vmem:[#allocation7 + $0x10] sm:$0xf]
    %v101 = vld [vmem:[#allocation7 + $0x14] sm:$0xf]
    %v102 = vld [vmem:[#allocation7 + $0x18] sm:$0xf]
    %v103 = vld [vmem:[#allocation7 + $0x1c] sm:$0xf]
    %v104 = vld [vmem:[#allocation7 + $0x20] sm:$0xf]
    %v105 = vld [vmem:[#allocation7 + $0x24] sm:$0xf]
    %v106 = vld [vmem:[#allocation7 + $0x28] sm:$0xf]
    %v107 = vld [vmem:[#allocation7 + $0x2c] sm:$0xf]
    %v108 = vld [vmem:[#allocation7 + $0x30] sm:$0xf]
    %v109 = vld [vmem:[#allocation7 + $0x34] sm:$0xf]
    %v110 = vld [vmem:[#allocation7 + $0x38] sm:$0xf]
    %v111 = vld [vmem:[#allocation7 + $0x3c] sm:$0xf]
    %v112 = vld [vmem:[%s3] sm:$0x1]
    %v114 = vlaneseq
    %v115 = vshrl.u32 %v114, 7
    %v116 = vsub.s32 0, %v115
    %v117 = vrot.slane %v112, %v116
    %v135 = vunpack.c.l.b16 %v96
    %v136 = vunpack.c.l.b16 %v97
    %v137 = vunpack.c.l.b16 %v98
    %v138 = vunpack.c.l.b16 %v99
    %v139 = vunpack.c.l.b16 %v100
    %v140 = vunpack.c.l.b16 %v101
    %v141 = vunpack.c.l.b16 %v102
    %v142 = vunpack.c.l.b16 %v103
    %v143 = vunpack.c.l.b16 %v104
    %v144 = vunpack.c.l.b16 %v105
    %v145 = vunpack.c.l.b16 %v106
    %v146 = vunpack.c.l.b16 %v107
    %v147 = vunpack.c.l.b16 %v108
    %v148 = vunpack.c.l.b16 %v109
    %v149 = vunpack.c.l.b16 %v110
    %v150 = vunpack.c.l.b16 %v111
    %v151 = vpack.c.b16 %v136, %v135
    %v152 = vpack.c.b16 %v138, %v137
    %v153 = vpack.c.b16 %v140, %v139
    %v154 = vpack.c.b16 %v142, %v141
    %v155 = vpack.c.b16 %v144, %v143
    %v156 = vpack.c.b16 %v146, %v145
    %v157 = vpack.c.b16 %v148, %v147
    %v158 = vpack.c.b16 %v150, %v149
    %167 = vmatprep.subr.bf16.mxu0 0
    %168 = vmatpush1.bf16.msra.mxu0 %v151
    %169 = vmatprep.subr.bf16.mxu0 0
    %170 = vmatpush1.bf16.msra.mxu0 %v152
    %171 = vmatprep.subr.bf16.mxu0 0
    %172 = vmatpush1.bf16.msra.mxu0 %v153
    %173 = vmatprep.subr.bf16.mxu0 0
    %174 = vmatpush1.bf16.msra.mxu0 %v154
    %175 = vmatprep.subr.bf16.mxu0 0
    %176 = vmatpush1.bf16.msra.mxu0 %v155
    %177 = vmatprep.subr.bf16.mxu0 0
    %178 = vmatpush1.bf16.msra.mxu0 %v156
    %179 = vmatprep.subr.bf16.mxu0 0
    %180 = vmatpush1.bf16.msra.mxu0 %v157
    %181 = vmatprep.subr.bf16.mxu0 0
    %182 = vmatpush1.bf16.msra.mxu0 %v158
    %183 = vmatprep.subr.bf16.mxu0 0
    %184 = vmatpush1.bf16.msra.mxu0 0
    %185 = vmatprep.subr.bf16.mxu0 0
    %186 = vmatpush1.bf16.msra.mxu0 0
    %187 = vmatprep.subr.bf16.mxu0 0
    %188 = vmatpush1.bf16.msra.mxu0 0
    %189 = vmatprep.subr.bf16.mxu0 0
    %190 = vmatpush1.bf16.msra.mxu0 0
    %191 = vmatprep.subr.bf16.mxu0 0
    %192 = vmatpush1.bf16.msra.mxu0 0
    %193 = vmatprep.subr.bf16.mxu0 0
    %194 = vmatpush1.bf16.msra.mxu0 0
    %195 = vmatprep.subr.bf16.mxu0 0
    %196 = vmatpush1.bf16.msra.mxu0 0
    %197 = vmatprep.subr.bf16.mxu0 0
    %198 = vmatpush1.bf16.msra.mxu0 0
    %199 = vmatprep.mubr.bf16.mxu0 0
    %200 = vmatmul.mubr.bf16.gmra.mrb[0].mxu0 %v95
    %v201 = vpop.f32.mrb[0].mxu0
    %v202 = vadd.f32 %v117, %v201
    %v203 = vpop.f32.mrb[0].mxu0
    %v204 = vpop.f32.mrb[0].mxu0
    %v205 = vpop.f32.mrb[0].mxu0
    %206 = vdwg.mxu0
    %v207 = vtanh.pop %v202
    %v208 = vpack.c.bf16 %v207, %v207
    %v209 = vld [vmem:[#allocation8] sm:$0xf]
    %v210 = vld [vmem:[#allocation8 + $0x4] sm:$0xf]
    %v211 = vld [vmem:[#allocation8 + $0x8] sm:$0xf]
    %v212 = vld [vmem:[#allocation8 + $0xc] sm:$0xf]
    %v213 = vld [vmem:[#allocation8 + $0x10] sm:$0xf]
    %v214 = vld [vmem:[#allocation8 + $0x14] sm:$0xf]
    %v215 = vld [vmem:[#allocation8 + $0x18] sm:$0xf]
    %v216 = vld [vmem:[#allocation8 + $0x1c] sm:$0xf]
    %v217 = vld [vmem:[#allocation8 + $0x20] sm:$0xf]
    %v218 = vld [vmem:[#allocation8 + $0x24] sm:$0xf]
    %v219 = vld [vmem:[#allocation8 + $0x28] sm:$0xf]
    %v220 = vld [vmem:[#allocation8 + $0x2c] sm:$0xf]
    %v221 = vld [vmem:[#allocation8 + $0x30] sm:$0xf]
    %v222 = vld [vmem:[#allocation8 + $0x34] sm:$0xf]
    %v223 = vld [vmem:[#allocation8 + $0x38] sm:$0xf]
    %v224 = vld [vmem:[#allocation8 + $0x3c] sm:$0xf]
    %v225 = vld [vmem:[%s5] sm:$0x1]
    %v227 = vlaneseq
    %v228 = vshrl.u32 %v227, 7
    %v229 = vsub.s32 0, %v228
    %v230 = vrot.slane %v225, %v229
    %v248 = vunpack.c.l.b16 %v209
    %v249 = vunpack.c.l.b16 %v210
    %v250 = vunpack.c.l.b16 %v211
    %v251 = vunpack.c.l.b16 %v212
    %v252 = vunpack.c.l.b16 %v213
    %v253 = vunpack.c.l.b16 %v214
    %v254 = vunpack.c.l.b16 %v215
    %v255 = vunpack.c.l.b16 %v216
    %v256 = vunpack.c.l.b16 %v217
    %v257 = vunpack.c.l.b16 %v218
    %v258 = vunpack.c.l.b16 %v219
    %v259 = vunpack.c.l.b16 %v220
    %v260 = vunpack.c.l.b16 %v221
    %v261 = vunpack.c.l.b16 %v222
    %v262 = vunpack.c.l.b16 %v223
    %v263 = vunpack.c.l.b16 %v224
    %v264 = vpack.c.b16 %v249, %v248
    %v265 = vpack.c.b16 %v251, %v250
    %v266 = vpack.c.b16 %v253, %v252
    %v267 = vpack.c.b16 %v255, %v254
    %v268 = vpack.c.b16 %v257, %v256
    %v269 = vpack.c.b16 %v259, %v258
    %v270 = vpack.c.b16 %v261, %v260
    %v271 = vpack.c.b16 %v263, %v262
    %280 = vmatprep.subr.bf16.mxu0 0
    %281 = vmatpush1.bf16.msra.mxu0 %v264
    %282 = vmatprep.subr.bf16.mxu0 0
    %283 = vmatpush1.bf16.msra.mxu0 %v265
    %284 = vmatprep.subr.bf16.mxu0 0
    %285 = vmatpush1.bf16.msra.mxu0 %v266
    %286 = vmatprep.subr.bf16.mxu0 0
    %287 = vmatpush1.bf16.msra.mxu0 %v267
    %288 = vmatprep.subr.bf16.mxu0 0
    %289 = vmatpush1.bf16.msra.mxu0 %v268
    %290 = vmatprep.subr.bf16.mxu0 0
    %291 = vmatpush1.bf16.msra.mxu0 %v269
    %292 = vmatprep.subr.bf16.mxu0 0
    %293 = vmatpush1.bf16.msra.mxu0 %v270
    %294 = vmatprep.subr.bf16.mxu0 0
    %295 = vmatpush1.bf16.msra.mxu0 %v271
    %296 = vmatprep.subr.bf16.mxu0 0
    %297 = vmatpush1.bf16.msra.mxu0 0
    %298 = vmatprep.subr.bf16.mxu0 0
    %299 = vmatpush1.bf16.msra.mxu0 0
    %300 = vmatprep.subr.bf16.mxu0 0
    %301 = vmatpush1.bf16.msra.mxu0 0
    %302 = vmatprep.subr.bf16.mxu0 0
    %303 = vmatpush1.bf16.msra.mxu0 0
    %304 = vmatprep.subr.bf16.mxu0 0
    %305 = vmatpush1.bf16.msra.mxu0 0
    %306 = vmatprep.subr.bf16.mxu0 0
    %307 = vmatpush1.bf16.msra.mxu0 0
    %308 = vmatprep.subr.bf16.mxu0 0
    %309 = vmatpush1.bf16.msra.mxu0 0
    %310 = vmatprep.subr.bf16.mxu0 0
    %311 = vmatpush1.bf16.msra.mxu0 0
    %312 = vmatprep.mubr.bf16.mxu0 0
    %313 = vmatmul.mubr.bf16.gmra.mrb[0].mxu0 %v208
    %v314 = vpop.f32.mrb[0].mxu0
    %v315 = vadd.f32 %v230, %v314
    %v316 = vpop.f32.mrb[0].mxu0
    %v317 = vpop.f32.mrb[0].mxu0
    %v318 = vpop.f32.mrb[0].mxu0
    %319 = vdwg.mxu0
    %v320 = vtanh.pop %v315
    %v321 = vpack.c.bf16 %v320, %v320
    %v322 = vld [vmem:[#allocation10] sm:$0xf]
    %v323 = vld [vmem:[#allocation10 + $0x4] sm:$0xf]
    %v324 = vld [vmem:[#allocation10 + $0x8] sm:$0xf]
    %v325 = vld [vmem:[#allocation10 + $0xc] sm:$0xf]
    %v326 = vld [vmem:[#allocation10 + $0x10] sm:$0xf]
    %v327 = vld [vmem:[#allocation10 + $0x14] sm:$0xf]
    %v328 = vld [vmem:[#allocation10 + $0x18] sm:$0xf]
    %v329 = vld [vmem:[#allocation10 + $0x1c] sm:$0xf]
    %v330 = vld [vmem:[#allocation10 + $0x20] sm:$0xf]
    %v331 = vld [vmem:[#allocation10 + $0x24] sm:$0xf]
    %v332 = vld [vmem:[#allocation10 + $0x28] sm:$0xf]
    %v333 = vld [vmem:[#allocation10 + $0x2c] sm:$0xf]
    %v334 = vld [vmem:[#allocation10 + $0x30] sm:$0xf]
    %v335 = vld [vmem:[#allocation10 + $0x34] sm:$0xf]
    %v336 = vld [vmem:[#allocation10 + $0x38] sm:$0xf]
    %v337 = vld [vmem:[#allocation10 + $0x3c] sm:$0xf]
    %v338 = vld [vmem:[%s7] sm:$0x1]
    %v340 = vlaneseq
    %v341 = vshrl.u32 %v340, 7
    %v342 = vsub.s32 0, %v341
    %v343 = vrot.slane %v338, %v342
    %v361 = vunpack.c.l.b16 %v322
    %v362 = vunpack.c.l.b16 %v323
    %v363 = vunpack.c.l.b16 %v324
    %v364 = vunpack.c.l.b16 %v325
    %v365 = vunpack.c.l.b16 %v326
    %v366 = vunpack.c.l.b16 %v327
    %v367 = vunpack.c.l.b16 %v328
    %v368 = vunpack.c.l.b16 %v329
    %v369 = vunpack.c.l.b16 %v330
    %v370 = vunpack.c.l.b16 %v331
    %v371 = vunpack.c.l.b16 %v332
    %v372 = vunpack.c.l.b16 %v333
    %v373 = vunpack.c.l.b16 %v334
    %v374 = vunpack.c.l.b16 %v335
    %v375 = vunpack.c.l.b16 %v336
    %v376 = vunpack.c.l.b16 %v337
    %v377 = vpack.c.b16 %v362, %v361
    %v378 = vpack.c.b16 %v364, %v363
    %v379 = vpack.c.b16 %v366, %v365
    %v380 = vpack.c.b16 %v368, %v367
    %v381 = vpack.c.b16 %v370, %v369
    %v382 = vpack.c.b16 %v372, %v371
    %v383 = vpack.c.b16 %v374, %v373
    %v384 = vpack.c.b16 %v376, %v375
    %393 = vmatprep.subr.bf16.mxu0 0
    %394 = vmatpush1.bf16.msra.mxu0 %v377
    %395 = vmatprep.subr.bf16.mxu0 0
    %396 = vmatpush1.bf16.msra.mxu0 %v378
    %397 = vmatprep.subr.bf16.mxu0 0
    %398 = vmatpush1.bf16.msra.mxu0 %v379
    %399 = vmatprep.subr.bf16.mxu0 0
    %400 = vmatpush1.bf16.msra.mxu0 %v380
    %401 = vmatprep.subr.bf16.mxu0 0
    %402 = vmatpush1.bf16.msra.mxu0 %v381
    %403 = vmatprep.subr.bf16.mxu0 0
    %404 = vmatpush1.bf16.msra.mxu0 %v382
    %405 = vmatprep.subr.bf16.mxu0 0
    %406 = vmatpush1.bf16.msra.mxu0 %v383
    %407 = vmatprep.subr.bf16.mxu0 0
    %408 = vmatpush1.bf16.msra.mxu0 %v384
    %409 = vmatprep.subr.bf16.mxu0 0
    %410 = vmatpush1.bf16.msra.mxu0 0
    %411 = vmatprep.subr.bf16.mxu0 0
    %412 = vmatpush1.bf16.msra.mxu0 0
    %413 = vmatprep.subr.bf16.mxu0 0
    %414 = vmatpush1.bf16.msra.mxu0 0
    %415 = vmatprep.subr.bf16.mxu0 0
    %416 = vmatpush1.bf16.msra.mxu0 0
    %417 = vmatprep.subr.bf16.mxu0 0
    %418 = vmatpush1.bf16.msra.mxu0 0
    %419 = vmatprep.subr.bf16.mxu0 0
    %420 = vmatpush1.bf16.msra.mxu0 0
    %421 = vmatprep.subr.bf16.mxu0 0
    %422 = vmatpush1.bf16.msra.mxu0 0
    %423 = vmatprep.subr.bf16.mxu0 0
    %424 = vmatpush1.bf16.msra.mxu0 0
    %425 = vmatprep.mubr.bf16.mxu0 0
    %426 = vmatmul.mubr.bf16.gmra.mrb[0].mxu0 %v321
    %v427 = vpop.f32.mrb[0].mxu0
    %v428 = vadd.f32 %v343, %v427
    %v429 = vpop.f32.mrb[0].mxu0
    %v430 = vpop.f32.mrb[0].mxu0
    %v431 = vpop.f32.mrb[0].mxu0
    %432 = vdwg.mxu0
    %v433 = vlaneseq
    %v434 = vand.u32 %v433, 127
    %vm435 = vcmp.lt.s32.totalorder %v434, 4
    %vm436 = vcmp.eq.s32.totalorder %v434, 4
    %v437 = vsel %vm436, %v428, 0.0
    %438 = vadd.xlane.f32.xlu0 %v437
    %v439 = vpop.xlane.xlu0 %438
    %v440 = vsel %vm435, %v428, -1e+30
    %v441 = vld [vmem:[#allocation5] sm:$0xff]
    %v442 = vadd.f32 %v440, %v441
    %443 = vmax.xlane.f32.xlu0 %v442
    %v444 = vpop.xlane.xlu0 %443
    %vm445 = vcmp.ge.f32.partialorder %v442, %v444
    %v446 = vsel %vm445, %v434, 128
    %v447 = vand.u32 %v446, 65535
    %v448 = vshra.s32 %v446, 16
    %v449 = vcvt.s32.f32 %v447
    %v450 = vcvt.s32.f32 %v448
    %451 = vmin.xlane.f32.xlu0 %v450
    %v452 = vpop.xlane.xlu0 %451
    %vm453 = vcmp.eq.f32.partialorder %v450, %v452
    %v454 = vsel %vm453, %v449, inf
    %455 = vmin.xlane.f32.xlu0 %v454
    %v456 = vpop.xlane.xlu0 %455
    %v457 = vcvt.f32.s32 %v456
    %v458 = vcvt.f32.s32 %v452
    %v459 = vshll.u32 %v458, 16
    %v460 = vadd.s32 %v459, %v457
    %461 = vmax.xlane.f32.xlu0 %v440
    %v462 = vpop.xlane.xlu0 %461
    %v463 = vsub.f32 %v440, %v462
    %v464 = vmul.f32 %v463, 1.442695
    %v465 = vpow.pop %v464
    %v466 = vsel %vm435, %v465, 0.0
    %467 = vadd.xlane.f32.xlu0 %v466
    %v468 = vpop.xlane.xlu0 %467
    %v469 = vlog2.pop %v468
    %v470 = vmul.f32 %v469, 0.6931472
    %v471 = vsub.f32 %v463, %v470
    %v472 = vrcp.pop %v468
    %v473 = vmul.f32 %v466, %v472
    %vm474 = vcmp.eq.s32.totalorder %v434, %v460
    %v475 = vsel %vm474, %v471, 0.0
    %476 = vadd.xlane.f32.xlu0 %v475
    %v477 = vpop.xlane.xlu0 %476
    %v478 = vsub.f32 0.0, %v477
    %v479 = vsel %vm435, %v471, 0.0
    %v480 = vmul.f32 %v473, %v479
    %481 = vadd.xlane.f32.xlu0 %v480
    %v482 = vpop.xlane.xlu0 %481
    %v483 = vsub.f32 0.0, %v482
    %vm484 = vcmp.eq.s32.totalorder %v434, 0
    %vm485 = vcmp.eq.s32.totalorder %v434, 1
    %v486 = vcvt.s32.f32 %v460
    %vm487 = vcmp.eq.s32.totalorder %v434, 2
    %vm488 = vcmp.eq.s32.totalorder %v434, 3
    %v489 = vsel %vm488, %v483, 0.0
    %v490 = vsel %vm487, %v478, %v489
    %v491 = vsel %vm485, %v486, %v490
    %v492 = vsel %vm484, %v439, %v491
    %493 = vst [vmem:[#allocation11] sm:$0xff] %v492
    // Predicated region
    $region54: #{tpu_custom_call.1} parent=1 // pred_check
      _
    $region55: #{tpu_custom_call.1} parent=1 // pred_check_branch
      %495 = sbr.rel (0) target = $region57
    $region56: #{tpu_custom_call.1} parent=1 // pred_region
      %s497 = ssub.s32 128, 128
      %498 = vsyncadd [#allocation4], %s497
      %s500 = sshll.u32 [#allocation11], 4
      %s501 = int_to_ptr.vmem [resolvable:$true] %s500
      %503 = dma.vmem_to_hbm [thread:$0]  %s501, 128, %s8, [#allocation4]
    $region57: #{tpu_custom_call.1} parent=1 // pred_fallthru
      _
    // Predicated region
    $region58: #{tpu_custom_call.1} parent=1 // pred_check
      _
    $region59: #{tpu_custom_call.1} parent=1 // pred_check_branch
      %505 = sbr.rel (0) target = $region61
    $region60: #{tpu_custom_call.1} parent=1 // pred_region
      %506 = dma.done [#allocation4], 128
    $region61: #{tpu_custom_call.1} parent=1 // pred_fallthru
      _
    %507 = vsyncpa [#allocation3], 1
    %508 = vsyncpa [#allocation6], 1
    %509 = vsyncpa [#allocation9], 1
    %510 = vsyncpa [#allocation4], 1

</llo_original>
